<compile_context>
chip_gen: v6e
topology: v6e:2x2x1
jax: 0.10.0
libtpu: 0.0.40
codegen_flags: <defaults>
</compile_context>

<pallas_src>
import functools

import jax
import jax.numpy as jnp
from jax.experimental import pallas as pl
from jax.experimental.pallas import tpu as pltpu

_LANE = 128
_SUBLANE = 8


def _round_up(n, m):
    return (n + m - 1) // m * m


def _mlp_kernel(x_ref, w1_ref, b1_ref, w2_ref, b2_ref, w3_ref, b3_ref, o_ref,
                *, batch, tile_b):
    """One batch tile: three fused matmul+bias+ReLU layers, then row softmax."""
    mm = w1_ref.dtype  # matmul-input dtype (f32 or bf16); accumulation is f32

    # Layer 1: (TB, D_in) @ (D_in, 256)
    h = jnp.dot(x_ref[...].astype(mm), w1_ref[...],
                preferred_element_type=jnp.float32)
    h = jnp.maximum(h + b1_ref[...], 0.0)

    # Layer 2: (TB, 256) @ (256, 128-padded hidden)
    h = jnp.dot(h.astype(mm), w2_ref[...], preferred_element_type=jnp.float32)
    h = jnp.maximum(h + b2_ref[...], 0.0)

    # Layer 3: (TB, 128) @ (128, out_dim)  -- output kept at its real width
    h = jnp.dot(h.astype(mm), w3_ref[...], preferred_element_type=jnp.float32)
    h = jnp.maximum(h + b3_ref[...], 0.0)

    # Ragged last tile: zero garbage rows before the softmax so they cannot
    # produce NaN/Inf (their output rows are out-of-bounds and discarded).
    if batch % tile_b != 0:
        row = pl.program_id(0) * tile_b + jax.lax.broadcasted_iota(
            jnp.int32, h.shape, 0)
        h = jnp.where(row < batch, h, 0.0)

    # Numerically stable softmax over the feature (lane) axis.
    m = jnp.max(h, axis=-1, keepdims=True)
    e = jnp.exp(h - m)
    denom = jnp.sum(e, axis=-1, keepdims=True)
    o_ref[...] = (e * pl.reciprocal(denom, approx=True)).astype(o_ref.dtype)


def prepare_params(params, *, use_bf16_matmul=True):
    """One-time param prep (hoisted out of the per-call path).

    Lane-pads the narrow hidden dim (32 -> 128) with zeros and casts weights
    to the matmul-input dtype.  Biases stay f32.  The output dim is NOT padded.
    """
    w1, b1, w2, b2, w3, b3 = params
    h2_dim = w2.shape[1]
    h2_pad = _round_up(h2_dim, _LANE)
    mm_dtype = jnp.bfloat16 if use_bf16_matmul else jnp.float32

    w1p = jnp.asarray(w1).astype(mm_dtype)
    w2p = jnp.pad(jnp.asarray(w2), ((0, 0), (0, h2_pad - h2_dim))).astype(mm_dtype)
    w3p = jnp.pad(jnp.asarray(w3), ((0, h2_pad - h2_dim), (0, 0))).astype(mm_dtype)
    b1p = jnp.asarray(b1, jnp.float32).reshape(1, -1)
    b2p = jnp.pad(jnp.asarray(b2, jnp.float32).reshape(1, -1),
                  ((0, 0), (0, h2_pad - h2_dim)))
    b3p = jnp.asarray(b3, jnp.float32).reshape(1, -1)
    return (w1p, b1p, w2p, b2p, w3p, b3p)


def mlp_forward(x, prepared_params, *, tile_b=None, vmem_limit_bytes=None,
                out_dtype=jnp.float32):
    """Fused MLP forward. x: (B, input_dim). Returns (None, probs[B, out_dim])."""
    w1p, b1p, w2p, b2p, w3p, b3p = prepared_params
    batch, in_dim = x.shape
    assert in_dim == w1p.shape[0], "x feature dim must match W1"
    h1_dim = w1p.shape[1]          # 256 (lane-dense)
    h2_pad = w2p.shape[1]          # 32 -> 128 (lane padded)
    out_dim = w3p.shape[1]         # real output width

    # --- batch tiling --------------------------------------------------------
    if tile_b is None:
        # Big tiles amortize the ~0.35 us per-grid-step overhead; cap at half
        # the batch (rounded to sublanes) so both v7x TensorCores get work.
        half_batch = _round_up(max((batch + 1) // 2, _SUBLANE), _SUBLANE)
        tile_b = min(2048, half_batch)
    tile_b = max(_SUBLANE, _round_up(tile_b, _SUBLANE))
    grid = (pl.cdiv(batch, tile_b),)

    # --- advisory cost estimate ----------------------------------------------
    flops = 2 * batch * (in_dim * h1_dim + h1_dim * h2_pad + h2_pad * out_dim)
    w_bytes = sum(int(a.size) * a.dtype.itemsize
                  for a in (w1p, b1p, w2p, b2p, w3p, b3p))
    bytes_accessed = (int(x.size) * x.dtype.itemsize
                      + batch * out_dim * jnp.dtype(out_dtype).itemsize
                      + w_bytes)
    cost = pl.CostEstimate(flops=flops,
                           transcendentals=batch * (out_dim + 1),
                           bytes_accessed=bytes_accessed)

    kernel = functools.partial(_mlp_kernel, batch=batch, tile_b=tile_b)

    probs = pl.pallas_call(
        kernel,
        out_shape=jax.ShapeDtypeStruct((batch, out_dim), out_dtype),
        grid=grid,
        in_specs=[
            pl.BlockSpec((tile_b, in_dim), lambda i: (i, 0)),    # x tile
            pl.BlockSpec((in_dim, h1_dim), lambda i: (0, 0)),    # w1 (resident)
            pl.BlockSpec((1, h1_dim), lambda i: (0, 0)),         # b1
            pl.BlockSpec((h1_dim, h2_pad), lambda i: (0, 0)),    # w2
            pl.BlockSpec((1, h2_pad), lambda i: (0, 0)),         # b2
            pl.BlockSpec((h2_pad, out_dim), lambda i: (0, 0)),   # w3
            pl.BlockSpec((1, out_dim), lambda i: (0, 0)),        # b3
        ],
        out_specs=pl.BlockSpec((tile_b, out_dim), lambda i: (i, 0)),
        compiler_params=pltpu.CompilerParams(
            dimension_semantics=("parallel",),       # megacore split on v7x
            vmem_limit_bytes=vmem_limit_bytes,
        ),
        cost_estimate=cost,
    )(x, w1p, b1p, w2p, b2p, w3p, b3p)

    return None, probs


def init_params(key, input_dim, output_dim):
    """Deterministic synthetic parameters (nn.Linear shapes, pre-transposed)."""
    k1, k2, k3, k4, k5, k6 = jax.random.split(key, 6)
    w1 = jax.random.normal(k1, (input_dim, 256), jnp.float32) * 0.05
    b1 = jax.random.normal(k2, (1, 256), jnp.float32) * 0.05
    w2 = jax.random.normal(k3, (256, 32), jnp.float32) * 0.05
    b2 = jax.random.normal(k4, (1, 32), jnp.float32) * 0.05
    w3 = jax.random.normal(k5, (32, output_dim), jnp.float32) * 0.05
    b3 = jax.random.normal(k6, (1, output_dim), jnp.float32) * 0.05
    # NOTE: self.log_Z is an unused-in-forward scalar parameter; not needed here.
    return (w1, b1, w2, b2, w3, b3)


def _reference(x, params):
    w1, b1, w2, b2, w3, b3 = params
    h = jnp.maximum(x @ w1 + b1, 0.0)
    h = jnp.maximum(h @ w2 + b2, 0.0)
    h = jnp.maximum(h @ w3 + b3, 0.0)
    return jax.nn.softmax(h, axis=1)


if __name__ == "__main__":
    key = jax.random.PRNGKey(0)
    kx1, kx2, kp = jax.random.split(key, 3)

    input_dim, output_dim = 64, 16
    params = init_params(kp, input_dim, output_dim)

    # Param prep happens once (hoisted out of the per-call path).
    params_f32 = prepare_params(params, use_bf16_matmul=False)
    params_bf16 = prepare_params(params, use_bf16_matmul=True)   # default perf path

    # Test 1: small batch, single grid step, exact f32 matmuls.
    x1 = jax.random.normal(kx1, (8, input_dim), jnp.float32)
    _, p1 = mlp_forward(x1, params_f32)
    p1 = jax.block_until_ready(p1)
    r1 = _reference(x1, params)
    assert p1.shape == (8, output_dim)
    assert jnp.allclose(p1, r1, atol=2e-3, rtol=2e-3)
    assert jnp.allclose(jnp.sum(p1, axis=1), 1.0, atol=5e-3)

    # Test 2: batch not a multiple of the tile -> 2 grid steps, ragged last
    # tile handled in-kernel (no wrapper-side pad/slice), f32 matmuls.
    x2 = jax.random.normal(kx2, (200, input_dim), jnp.float32)
    _, p2 = mlp_forward(x2, params_f32, tile_b=128)
    p2 = jax.block_until_ready(p2)
    r2 = _reference(x2, params)
    assert p2.shape == (200, output_dim)
    assert jnp.allclose(p2, r2, atol=2e-3, rtol=2e-3)
    assert jnp.allclose(jnp.sum(p2, axis=1), 1.0, atol=5e-3)

    # Test 3: default perf path — bf16 matmul inputs (f32 accumulation),
    # auto tile selection (>=2 grid steps for v7x megacore).
    _, p3 = mlp_forward(x2, params_bf16)
    p3 = jax.block_until_ready(p3)
    assert p3.shape == (200, output_dim)
    assert jnp.allclose(p3, r2, atol=2e-2, rtol=2e-2)
    assert jnp.allclose(jnp.sum(p3, axis=1), 1.0, atol=5e-3)

    print("KERNEL_OK")
</pallas_src>

<mosaic_0001>
module attributes {stable_mosaic.version = 11 : i64} {
  func.func @_mlp_kernel(%arg0: i32, %arg1: memref<8x64xf32, #tpu.memory_space<vmem>>, %arg2: memref<64x256xf32, #tpu.memory_space<vmem>>, %arg3: memref<1x256xf32, #tpu.memory_space<vmem>>, %arg4: memref<256x128xf32, #tpu.memory_space<vmem>>, %arg5: memref<1x128xf32, #tpu.memory_space<vmem>>, %arg6: memref<128x16xf32, #tpu.memory_space<vmem>>, %arg7: memref<1x16xf32, #tpu.memory_space<vmem>>, %arg8: memref<8x16xf32, #tpu.memory_space<vmem>>) attributes {dimension_semantics = [#tpu.dimension_semantics<parallel>], iteration_bounds = array<i64: 1>, scalar_prefetch = 0 : i64, scratch_operands = 0 : i64, tpu.core_type = #tpu.core_type<tc>, window_params = [{transform_indices = @transform_0, window_bounds = array<i64: 8, 64>}, {pipeline_mode = #tpu.pipeline_mode<synchronous>, transform_indices = @transform_1, window_bounds = array<i64: 64, 256>}, {pipeline_mode = #tpu.pipeline_mode<synchronous>, transform_indices = @transform_2, window_bounds = array<i64: 1, 256>}, {pipeline_mode = #tpu.pipeline_mode<synchronous>, transform_indices = @transform_3, window_bounds = array<i64: 256, 128>}, {pipeline_mode = #tpu.pipeline_mode<synchronous>, transform_indices = @transform_4, window_bounds = array<i64: 1, 128>}, {pipeline_mode = #tpu.pipeline_mode<synchronous>, transform_indices = @transform_5, window_bounds = array<i64: 128, 16>}, {pipeline_mode = #tpu.pipeline_mode<synchronous>, transform_indices = @transform_6, window_bounds = array<i64: 1, 16>}, {transform_indices = @transform_7, window_bounds = array<i64: 8, 16>}]} {
    %c0 = arith.constant 0 : index
    %c0_0 = arith.constant 0 : index
    %0 = vector.load %arg1[%c0, %c0_0] : memref<8x64xf32, #tpu.memory_space<vmem>>, vector<8x64xf32>
    %c0_1 = arith.constant 0 : index
    %c0_2 = arith.constant 0 : index
    %1 = vector.load %arg2[%c0_1, %c0_2] : memref<64x256xf32, #tpu.memory_space<vmem>>, vector<64x256xf32>
    %cst = arith.constant dense<0.000000e+00> : vector<8x256xf32>
    %2 = tpu.matmul %0, %1, %cst {dimension_numbers = #tpu.dot_dimension_numbers<[1], [0], [0], [1], [0, 0, 1, 1], [], []>} : vector<8x64xf32>, vector<64x256xf32>, vector<8x256xf32> -> vector<8x256xf32>
    %c0_3 = arith.constant 0 : index
    %c0_4 = arith.constant 0 : index
    %3 = vector.load %arg3[%c0_3, %c0_4] : memref<1x256xf32, #tpu.memory_space<vmem>>, vector<1x256xf32>
    %4 = vector.broadcast %3 : vector<1x256xf32> to vector<8x256xf32>
    %5 = arith.addf %2, %4 : vector<8x256xf32>
    %cst_5 = arith.constant 0.000000e+00 : f32
    %6 = vector.broadcast %cst_5 : f32 to vector<8x256xf32>
    %7 = arith.maximumf %5, %6 : vector<8x256xf32>
    %c0_6 = arith.constant 0 : index
    %c0_7 = arith.constant 0 : index
    %8 = vector.load %arg4[%c0_6, %c0_7] : memref<256x128xf32, #tpu.memory_space<vmem>>, vector<256x128xf32>
    %cst_8 = arith.constant dense<0.000000e+00> : vector<8x128xf32>
    %9 = tpu.matmul %7, %8, %cst_8 {dimension_numbers = #tpu.dot_dimension_numbers<[1], [0], [0], [1], [0, 0, 1, 1], [], []>} : vector<8x256xf32>, vector<256x128xf32>, vector<8x128xf32> -> vector<8x128xf32>
    %c0_9 = arith.constant 0 : index
    %c0_10 = arith.constant 0 : index
    %10 = vector.load %arg5[%c0_9, %c0_10] : memref<1x128xf32, #tpu.memory_space<vmem>>, vector<1x128xf32>
    %11 = vector.broadcast %10 : vector<1x128xf32> to vector<8x128xf32>
    %12 = arith.addf %9, %11 : vector<8x128xf32>
    %cst_11 = arith.constant 0.000000e+00 : f32
    %13 = vector.broadcast %cst_11 : f32 to vector<8x128xf32>
    %14 = arith.maximumf %12, %13 : vector<8x128xf32>
    %c0_12 = arith.constant 0 : index
    %c0_13 = arith.constant 0 : index
    %15 = vector.load %arg6[%c0_12, %c0_13] : memref<128x16xf32, #tpu.memory_space<vmem>>, vector<128x16xf32>
    %cst_14 = arith.constant dense<0.000000e+00> : vector<8x16xf32>
    %16 = tpu.matmul %14, %15, %cst_14 {dimension_numbers = #tpu.dot_dimension_numbers<[1], [0], [0], [1], [0, 0, 1, 1], [], []>} : vector<8x128xf32>, vector<128x16xf32>, vector<8x16xf32> -> vector<8x16xf32>
    %c0_15 = arith.constant 0 : index
    %c0_16 = arith.constant 0 : index
    %17 = vector.load %arg7[%c0_15, %c0_16] : memref<1x16xf32, #tpu.memory_space<vmem>>, vector<1x16xf32>
    %18 = vector.broadcast %17 : vector<1x16xf32> to vector<8x16xf32>
    %19 = arith.addf %16, %18 : vector<8x16xf32>
    %cst_17 = arith.constant 0.000000e+00 : f32
    %20 = vector.broadcast %cst_17 : f32 to vector<8x16xf32>
    %21 = arith.maximumf %19, %20 : vector<8x16xf32>
    %cst_18 = arith.constant dense<0xFF800000> : vector<8xf32>
    %22 = vector.multi_reduction <maximumf>, %21, %cst_18 [1] : vector<8x16xf32> to vector<8xf32>
    %23 = vector.shape_cast %22 : vector<8xf32> to vector<8x1xf32>
    %24 = vector.broadcast %23 : vector<8x1xf32> to vector<8x16xf32>
    %25 = arith.subf %21, %24 : vector<8x16xf32>
    %26 = math.exp %25 : vector<8x16xf32>
    %cst_19 = arith.constant dense<0.000000e+00> : vector<8xf32>
    %27 = vector.multi_reduction <add>, %26, %cst_19 [1] : vector<8x16xf32> to vector<8xf32>
    %28 = vector.shape_cast %27 : vector<8xf32> to vector<8x1xf32>
    %29 = tpu.reciprocal %28 {approx = true} : vector<8x1xf32> -> vector<8x1xf32>
    %30 = vector.broadcast %29 : vector<8x1xf32> to vector<8x16xf32>
    %31 = arith.mulf %26, %30 : vector<8x16xf32>
    %c0_20 = arith.constant 0 : index
    %c0_21 = arith.constant 0 : index
    %32 = vector.load %arg8[%c0_20, %c0_21] : memref<8x16xf32, #tpu.memory_space<vmem>>, vector<8x16xf32>
    tpu.vector_store %arg8[%c0_20, %c0_21], %31 {strides = array<i32>} : memref<8x16xf32, #tpu.memory_space<vmem>>, vector<8x16xf32>,
    return
  }
  func.func @transform_0(%arg0: i32) -> (i32, i32) {
    %c0_i32 = arith.constant 0 : i32
    %c0_i32_0 = arith.constant 0 : i32
    return %arg0, %c0_i32 : i32, i32
  }
  func.func @transform_1(%arg0: i32) -> (i32, i32) {
    %c0_i32 = arith.constant 0 : i32
    %c0_i32_0 = arith.constant 0 : i32
    %c0_i32_1 = arith.constant 0 : i32
    return %c0_i32, %c0_i32_0 : i32, i32
  }
  func.func @transform_2(%arg0: i32) -> (i32, i32) {
    %c0_i32 = arith.constant 0 : i32
    %c0_i32_0 = arith.constant 0 : i32
    %c0_i32_1 = arith.constant 0 : i32
    return %c0_i32, %c0_i32_0 : i32, i32
  }
  func.func @transform_3(%arg0: i32) -> (i32, i32) {
    %c0_i32 = arith.constant 0 : i32
    %c0_i32_0 = arith.constant 0 : i32
    %c0_i32_1 = arith.constant 0 : i32
    return %c0_i32, %c0_i32_0 : i32, i32
  }
  func.func @transform_4(%arg0: i32) -> (i32, i32) {
    %c0_i32 = arith.constant 0 : i32
    %c0_i32_0 = arith.constant 0 : i32
    %c0_i32_1 = arith.constant 0 : i32
    return %c0_i32, %c0_i32_0 : i32, i32
  }
  func.func @transform_5(%arg0: i32) -> (i32, i32) {
    %c0_i32 = arith.constant 0 : i32
    %c0_i32_0 = arith.constant 0 : i32
    %c0_i32_1 = arith.constant 0 : i32
    return %c0_i32, %c0_i32_0 : i32, i32
  }
  func.func @transform_6(%arg0: i32) -> (i32, i32) {
    %c0_i32 = arith.constant 0 : i32
    %c0_i32_0 = arith.constant 0 : i32
    %c0_i32_1 = arith.constant 0 : i32
    return %c0_i32, %c0_i32_0 : i32, i32
  }
  func.func @transform_7(%arg0: i32) -> (i32, i32) {
    %c0_i32 = arith.constant 0 : i32
    %c0_i32_0 = arith.constant 0 : i32
    return %arg0, %c0_i32 : i32, i32
  }
}

</mosaic_0001>

<llo_original>
// kernel: tpu_custom_call.1
$region0: #{tpu_custom_call.1}
  #allocation0 [shape = 'u32[]', space=smem, size = 0x4, offset = 0x4, fixed_abs, tag = 'smem constant byte address 0x4 - core index']
  #allocation1 [shape = 'u32[144,128]{1,0:T(1,128)}', space=vmem, size = 0x12000, scoped, tag = 'internal scratch']
  %s0 = inlined_call_operand.vmem [shape: f32[8,64], index: 0, kind: input, shape index: {}]
  %s1 = inlined_call_operand.vmem [shape: f32[64,256], index: 1, kind: input, shape index: {}]
  %s2 = inlined_call_operand.vmem [shape: f32[1,256], index: 2, kind: input, shape index: {}]
  %s3 = inlined_call_operand.hbm [shape: f32[256,128], index: 3, kind: input, shape index: {}]
  %s4 = inlined_call_operand.vmem [shape: f32[1,128], index: 4, kind: input, shape index: {}]
  %s5 = inlined_call_operand.vmem [shape: f32[128,16], index: 5, kind: input, shape index: {}]
  %s6 = inlined_call_operand.vmem [shape: f32[1,16], index: 6, kind: input, shape index: {}]
  %s7 = inlined_call_operand.hbm [shape: f32[8,16], index: 7, kind: output, shape index: {}]
  %s8 = sld [smem:[#allocation0]]
  $region42: #{tpu_custom_call.1} parent=0
    _
  %s10 = ssub.s32 1, %s8
  %s11 = scalar_select 0, %s10, %s8
  $region1: #{tpu_custom_call.1} parent=0
    #allocation2 [shape = 'u8[131072]{0}', space=vmem, size = 0x20000, scoped, tag = 'input window, operand 3, single buffered']
    #allocation3 [shape = 's32[1]{0}', space=sflag, size = 0x4, scoped, tag = 'scoped memory for tpu_custom_call.1']
    #allocation4 [shape = 's32[1]{0}', space=sflag, size = 0x4, scoped, tag = 'scoped memory for tpu_custom_call.1']
    #allocation5 [shape = 'u8[4096]{0}', space=vmem, size = 0x1000, scoped, tag = 'output window, operand 0, single buffered']
    %12 = vsyncpa [#allocation3], 0
    %13 = vsyncpa [#allocation4], 0
    // Predicated region
    $region2: #{tpu_custom_call.1} parent=1 // pred_check
      _
    $region3: #{tpu_custom_call.1} parent=1 // pred_check_branch
      %15 = sbr.rel (0) target = $region5
    $region4: #{tpu_custom_call.1} parent=1 // pred_region
      _
    $region5: #{tpu_custom_call.1} parent=1 // pred_fallthru
      _
    // Predicated region
    $region6: #{tpu_custom_call.1} parent=1 // pred_check
      _
    $region7: #{tpu_custom_call.1} parent=1 // pred_check_branch
      %17 = sbr.rel (0) target = $region9
    $region8: #{tpu_custom_call.1} parent=1 // pred_region
      _
    $region9: #{tpu_custom_call.1} parent=1 // pred_fallthru
      _
    // Predicated region
    $region10: #{tpu_custom_call.1} parent=1 // pred_check
      _
    $region11: #{tpu_custom_call.1} parent=1 // pred_check_branch
      %19 = sbr.rel (0) target = $region13
    $region12: #{tpu_custom_call.1} parent=1 // pred_region
      _
    $region13: #{tpu_custom_call.1} parent=1 // pred_fallthru
      _
    // Predicated region
    $region14: #{tpu_custom_call.1} parent=1 // pred_check
      _
    $region15: #{tpu_custom_call.1} parent=1 // pred_check_branch
      %21 = sbr.rel (0) target = $region17
    $region16: #{tpu_custom_call.1} parent=1 // pred_region
      %s23 = ssub.s32 4096, 4096
      %24 = vsyncadd [#allocation3], %s23
      %s25 = sshll.u32 [#allocation2], 4
      %s26 = int_to_ptr.vmem [resolvable:$true] %s25
      %31 = dma.hbm_to_vmem [thread:$0]  %s3, 4096, %s26, [#allocation3], 128, 128, 8
    $region17: #{tpu_custom_call.1} parent=1 // pred_fallthru
      _
    // Predicated region
    $region18: #{tpu_custom_call.1} parent=1 // pred_check
      _
    $region19: #{tpu_custom_call.1} parent=1 // pred_check_branch
      %33 = sbr.rel (0) target = $region21
    $region20: #{tpu_custom_call.1} parent=1 // pred_region
      _
    $region21: #{tpu_custom_call.1} parent=1 // pred_fallthru
      _
    // Predicated region
    $region22: #{tpu_custom_call.1} parent=1 // pred_check
      _
    $region23: #{tpu_custom_call.1} parent=1 // pred_check_branch
      %35 = sbr.rel (0) target = $region25
    $region24: #{tpu_custom_call.1} parent=1 // pred_region
      _
    $region25: #{tpu_custom_call.1} parent=1 // pred_fallthru
      _
    // Predicated region
    $region26: #{tpu_custom_call.1} parent=1 // pred_check
      _
    $region27: #{tpu_custom_call.1} parent=1 // pred_check_branch
      %37 = sbr.rel (0) target = $region29
    $region28: #{tpu_custom_call.1} parent=1 // pred_region
      _
    $region29: #{tpu_custom_call.1} parent=1 // pred_fallthru
      _
    // Predicated region
    $region30: #{tpu_custom_call.1} parent=1 // pred_check
      _
    $region31: #{tpu_custom_call.1} parent=1 // pred_check_branch
      %39 = sbr.rel (0) target = $region33
    $region32: #{tpu_custom_call.1} parent=1 // pred_region
      %40 = dma.done [#allocation3], 4096
    $region33: #{tpu_custom_call.1} parent=1 // pred_fallthru
      _
    %v41 = vld [vmem:[%s0] sm:$0xff]
    %v42 = vld [vmem:[%s1] sm:$0xff]
    %v43 = vld [vmem:[%s1 + $0x8] sm:$0xff]
    %v44 = vld [vmem:[%s1 + $0x10] sm:$0xff]
    %v45 = vld [vmem:[%s1 + $0x18] sm:$0xff]
    %v46 = vld [vmem:[%s1 + $0x20] sm:$0xff]
    %v47 = vld [vmem:[%s1 + $0x28] sm:$0xff]
    %v48 = vld [vmem:[%s1 + $0x30] sm:$0xff]
    %v49 = vld [vmem:[%s1 + $0x38] sm:$0xff]
    %v50 = vld [vmem:[%s1 + $0x40] sm:$0xff]
    %v51 = vld [vmem:[%s1 + $0x48] sm:$0xff]
    %v52 = vld [vmem:[%s1 + $0x50] sm:$0xff]
    %v53 = vld [vmem:[%s1 + $0x58] sm:$0xff]
    %v54 = vld [vmem:[%s1 + $0x60] sm:$0xff]
    %v55 = vld [vmem:[%s1 + $0x68] sm:$0xff]
    %v56 = vld [vmem:[%s1 + $0x70] sm:$0xff]
    %v57 = vld [vmem:[%s1 + $0x78] sm:$0xff]
    %v58 = vld [vmem:[%s2] sm:$0x3]
    %v60 = vlaneseq
    %v61 = vshrl.u32 %v60, 7
    %v62 = vsub.s32 0, %v61
    %v63 = vrot.slane %v58, %v62
    %v64 = vlaneseq
    %v65 = vshrl.u32 %v64, 7
    %v66 = vsub.s32 1, %v65
    %v67 = vrot.slane %v58, %v66
    %vm70 = vcmask 523264
    %v72 = vsel %vm70, %v41, 0
    %74 = vmatprep.subr.mxu0 0.0
    %75 = vmatpush1.msra.mxu0 0.0
    %76 = vmatprep.subr.mxu0 0.0
    %77 = vmatpush1.msra.mxu0 0.0
    %78 = vmatprep.subr.mxu0 0.0
    %79 = vmatpush1.msra.mxu0 0.0
    %80 = vmatprep.subr.mxu0 0.0
    %81 = vmatpush1.msra.mxu0 0.0
    %82 = vmatprep.subr.mxu0 0.0
    %83 = vmatpush1.msra.mxu0 0.0
    %84 = vmatprep.subr.mxu0 0.0
    %85 = vmatpush1.msra.mxu0 0.0
    %86 = vmatprep.subr.mxu0 0.0
    %87 = vmatpush1.msra.mxu0 0.0
    %88 = vmatprep.subr.mxu0 0.0
    %89 = vmatpush1.msra.mxu0 0.0
    %90 = vmatprep.subr.mxu0 %v57
    %91 = vmatpush1.msra.mxu0 %v56
    %92 = vmatprep.subr.mxu0 %v55
    %93 = vmatpush1.msra.mxu0 %v54
    %94 = vmatprep.subr.mxu0 %v53
    %95 = vmatpush1.msra.mxu0 %v52
    %96 = vmatprep.subr.mxu0 %v51
    %97 = vmatpush1.msra.mxu0 %v50
    %98 = vmatprep.subr.mxu0 %v49
    %99 = vmatpush1.msra.mxu0 %v48
    %100 = vmatprep.subr.mxu0 %v47
    %101 = vmatpush1.msra.mxu0 %v46
    %102 = vmatprep.subr.mxu0 %v45
    %103 = vmatpush1.msra.mxu0 %v44
    %104 = vmatprep.subr.mxu0 %v43
    %105 = vmatpush1.msra.mxu0 %v42
    %106 = vmatprep.subr.mxu0 0.0
    %107 = vmatpush2.msra.mxu0 0.0
    %108 = vmatprep.subr.mxu0 0.0
    %109 = vmatpush2.msra.mxu0 0.0
    %110 = vmatprep.subr.mxu0 0.0
    %111 = vmatpush2.msra.mxu0 0.0
    %112 = vmatprep.subr.mxu0 0.0
    %113 = vmatpush2.msra.mxu0 0.0
    %114 = vmatprep.subr.mxu0 0.0
    %115 = vmatpush2.msra.mxu0 0.0
    %116 = vmatprep.subr.mxu0 0.0
    %117 = vmatpush2.msra.mxu0 0.0
    %118 = vmatprep.subr.mxu0 0.0
    %119 = vmatpush2.msra.mxu0 0.0
    %120 = vmatprep.subr.mxu0 0.0
    %121 = vmatpush2.msra.mxu0 0.0
    %122 = vmatprep.subr.mxu0 0.0
    %123 = vmatpush2.msra.mxu0 0.0
    %124 = vmatprep.subr.mxu0 0.0
    %125 = vmatpush2.msra.mxu0 0.0
    %126 = vmatprep.subr.mxu0 0.0
    %127 = vmatpush2.msra.mxu0 0.0
    %128 = vmatprep.subr.mxu0 0.0
    %129 = vmatpush2.msra.mxu0 0.0
    %130 = vmatprep.subr.mxu0 0.0
    %131 = vmatpush2.msra.mxu0 0.0
    %132 = vmatprep.subr.mxu0 0.0
    %133 = vmatpush2.msra.mxu0 0.0
    %134 = vmatprep.subr.mxu0 0.0
    %135 = vmatpush2.msra.mxu0 0.0
    %136 = vmatprep.subr.mxu0 0.0
    %137 = vmatpush2.msra.mxu0 0.0
    %138 = vmatprep.mubr.f32.mxu0 0.0
    %139 = vmatmul.mubr.f32.gmra.mxu0 %v72
    %v140 = vpop.f32.mrf.mxu0
    %v141 = vadd.f32 %v63, %v140
    %v142 = vpop.f32.mrf.mxu0
    %v143 = vadd.f32 %v67, %v142
    %144 = vdwg.mxu0
    %v145 = vmax.f32 %v141, 0.0
    %v146 = vmax.f32 %v143, 0.0
    %v147 = vld [vmem:[#allocation2] sm:$0xff]
    %v148 = vld [vmem:[#allocation2 + $0x8] sm:$0xff]
    %v149 = vld [vmem:[#allocation2 + $0x10] sm:$0xff]
    %v150 = vld [vmem:[#allocation2 + $0x18] sm:$0xff]
    %v151 = vld [vmem:[#allocation2 + $0x20] sm:$0xff]
    %v152 = vld [vmem:[#allocation2 + $0x28] sm:$0xff]
    %v153 = vld [vmem:[#allocation2 + $0x30] sm:$0xff]
    %v154 = vld [vmem:[#allocation2 + $0x38] sm:$0xff]
    %v155 = vld [vmem:[#allocation2 + $0x40] sm:$0xff]
    %v156 = vld [vmem:[#allocation2 + $0x48] sm:$0xff]
    %v157 = vld [vmem:[#allocation2 + $0x50] sm:$0xff]
    %v158 = vld [vmem:[#allocation2 + $0x58] sm:$0xff]
    %v159 = vld [vmem:[#allocation2 + $0x60] sm:$0xff]
    %v160 = vld [vmem:[#allocation2 + $0x68] sm:$0xff]
    %v161 = vld [vmem:[#allocation2 + $0x70] sm:$0xff]
    %v162 = vld [vmem:[#allocation2 + $0x78] sm:$0xff]
    %v163 = vld [vmem:[#allocation2 + $0x80] sm:$0xff]
    %v164 = vld [vmem:[#allocation2 + $0x88] sm:$0xff]
    %v165 = vld [vmem:[#allocation2 + $0x90] sm:$0xff]
    %v166 = vld [vmem:[#allocation2 + $0x98] sm:$0xff]
    %v167 = vld [vmem:[#allocation2 + $0xa0] sm:$0xff]
    %v168 = vld [vmem:[#allocation2 + $0xa8] sm:$0xff]
    %v169 = vld [vmem:[#allocation2 + $0xb0] sm:$0xff]
    %v170 = vld [vmem:[#allocation2 + $0xb8] sm:$0xff]
    %v171 = vld [vmem:[#allocation2 + $0xc0] sm:$0xff]
    %v172 = vld [vmem:[#allocation2 + $0xc8] sm:$0xff]
    %v173 = vld [vmem:[#allocation2 + $0xd0] sm:$0xff]
    %v174 = vld [vmem:[#allocation2 + $0xd8] sm:$0xff]
    %v175 = vld [vmem:[#allocation2 + $0xe0] sm:$0xff]
    %v176 = vld [vmem:[#allocation2 + $0xe8] sm:$0xff]
    %v177 = vld [vmem:[#allocation2 + $0xf0] sm:$0xff]
    %v178 = vld [vmem:[#allocation2 + $0xf8] sm:$0xff]
    %v179 = vld [vmem:[%s4] sm:$0x1]
    %v181 = vlaneseq
    %v182 = vshrl.u32 %v181, 7
    %v183 = vsub.s32 0, %v182
    %v184 = vrot.slane %v179, %v183
    %186 = vmatprep.subr.mxu0 0.0
    %187 = vmatpush1.msra.mxu0 %v162
    %188 = vmatprep.subr.mxu0 0.0
    %189 = vmatpush1.msra.mxu0 %v161
    %190 = vmatprep.subr.mxu0 0.0
    %191 = vmatpush1.msra.mxu0 %v160
    %192 = vmatprep.subr.mxu0 0.0
    %193 = vmatpush1.msra.mxu0 %v159
    %194 = vmatprep.subr.mxu0 0.0
    %195 = vmatpush1.msra.mxu0 %v158
    %196 = vmatprep.subr.mxu0 0.0
    %197 = vmatpush1.msra.mxu0 %v157
    %198 = vmatprep.subr.mxu0 0.0
    %199 = vmatpush1.msra.mxu0 %v156
    %200 = vmatprep.subr.mxu0 0.0
    %201 = vmatpush1.msra.mxu0 %v155
    %202 = vmatprep.subr.mxu0 0.0
    %203 = vmatpush1.msra.mxu0 %v154
    %204 = vmatprep.subr.mxu0 0.0
    %205 = vmatpush1.msra.mxu0 %v153
    %206 = vmatprep.subr.mxu0 0.0
    %207 = vmatpush1.msra.mxu0 %v152
    %208 = vmatprep.subr.mxu0 0.0
    %209 = vmatpush1.msra.mxu0 %v151
    %210 = vmatprep.subr.mxu0 0.0
    %211 = vmatpush1.msra.mxu0 %v150
    %212 = vmatprep.subr.mxu0 0.0
    %213 = vmatpush1.msra.mxu0 %v149
    %214 = vmatprep.subr.mxu0 0.0
    %215 = vmatpush1.msra.mxu0 %v148
    %216 = vmatprep.subr.mxu0 0.0
    %217 = vmatpush1.msra.mxu0 %v147
    %218 = vmatprep.subr.mxu0 0.0
    %219 = vmatpush2.msra.mxu0 %v178
    %220 = vmatprep.subr.mxu0 0.0
    %221 = vmatpush2.msra.mxu0 %v177
    %222 = vmatprep.subr.mxu0 0.0
    %223 = vmatpush2.msra.mxu0 %v176
    %224 = vmatprep.subr.mxu0 0.0
    %225 = vmatpush2.msra.mxu0 %v175
    %226 = vmatprep.subr.mxu0 0.0
    %227 = vmatpush2.msra.mxu0 %v174
    %228 = vmatprep.subr.mxu0 0.0
    %229 = vmatpush2.msra.mxu0 %v173
    %230 = vmatprep.subr.mxu0 0.0
    %231 = vmatpush2.msra.mxu0 %v172
    %232 = vmatprep.subr.mxu0 0.0
    %233 = vmatpush2.msra.mxu0 %v171
    %234 = vmatprep.subr.mxu0 0.0
    %235 = vmatpush2.msra.mxu0 %v170
    %236 = vmatprep.subr.mxu0 0.0
    %237 = vmatpush2.msra.mxu0 %v169
    %238 = vmatprep.subr.mxu0 0.0
    %239 = vmatpush2.msra.mxu0 %v168
    %240 = vmatprep.subr.mxu0 0.0
    %241 = vmatpush2.msra.mxu0 %v167
    %242 = vmatprep.subr.mxu0 0.0
    %243 = vmatpush2.msra.mxu0 %v166
    %244 = vmatprep.subr.mxu0 0.0
    %245 = vmatpush2.msra.mxu0 %v165
    %246 = vmatprep.subr.mxu0 0.0
    %247 = vmatpush2.msra.mxu0 %v164
    %248 = vmatprep.subr.mxu0 0.0
    %249 = vmatpush2.msra.mxu0 %v163
    %250 = vmatprep.mubr.f32.mxu0 %v146
    %251 = vmatmul.mubr.f32.gmra.mxu0 %v145
    %v252 = vpop.f32.mrf.mxu0
    %v253 = vadd.f32 %v184, %v252
    %v254 = vpop.f32.mrf.mxu0
    %255 = vdwg.mxu0
    %v256 = vmax.f32 %v253, 0.0
    %v257 = vld [vmem:[%s5] sm:$0xff]
    %v258 = vld [vmem:[%s5 + $0x8] sm:$0xff]
    %v259 = vld [vmem:[%s5 + $0x10] sm:$0xff]
    %v260 = vld [vmem:[%s5 + $0x18] sm:$0xff]
    %v261 = vld [vmem:[%s5 + $0x20] sm:$0xff]
    %v262 = vld [vmem:[%s5 + $0x28] sm:$0xff]
    %v263 = vld [vmem:[%s5 + $0x30] sm:$0xff]
    %v264 = vld [vmem:[%s5 + $0x38] sm:$0xff]
    %v265 = vld [vmem:[%s5 + $0x40] sm:$0xff]
    %v266 = vld [vmem:[%s5 + $0x48] sm:$0xff]
    %v267 = vld [vmem:[%s5 + $0x50] sm:$0xff]
    %v268 = vld [vmem:[%s5 + $0x58] sm:$0xff]
    %v269 = vld [vmem:[%s5 + $0x60] sm:$0xff]
    %v270 = vld [vmem:[%s5 + $0x68] sm:$0xff]
    %v271 = vld [vmem:[%s5 + $0x70] sm:$0xff]
    %v272 = vld [vmem:[%s5 + $0x78] sm:$0xff]
    %v273 = vld [vmem:[%s6] sm:$0x1]
    %v275 = vlaneseq
    %v276 = vshrl.u32 %v275, 7
    %v277 = vsub.s32 0, %v276
    %v278 = vrot.slane %v273, %v277
    %280 = vmatprep.subr.mxu0 0.0
    %281 = vmatpush1.msra.mxu0 %v272
    %282 = vmatprep.subr.mxu0 0.0
    %283 = vmatpush1.msra.mxu0 %v271
    %284 = vmatprep.subr.mxu0 0.0
    %285 = vmatpush1.msra.mxu0 %v270
    %286 = vmatprep.subr.mxu0 0.0
    %287 = vmatpush1.msra.mxu0 %v269
    %288 = vmatprep.subr.mxu0 0.0
    %289 = vmatpush1.msra.mxu0 %v268
    %290 = vmatprep.subr.mxu0 0.0
    %291 = vmatpush1.msra.mxu0 %v267
    %292 = vmatprep.subr.mxu0 0.0
    %293 = vmatpush1.msra.mxu0 %v266
    %294 = vmatprep.subr.mxu0 0.0
    %295 = vmatpush1.msra.mxu0 %v265
    %296 = vmatprep.subr.mxu0 0.0
    %297 = vmatpush1.msra.mxu0 %v264
    %298 = vmatprep.subr.mxu0 0.0
    %299 = vmatpush1.msra.mxu0 %v263
    %300 = vmatprep.subr.mxu0 0.0
    %301 = vmatpush1.msra.mxu0 %v262
    %302 = vmatprep.subr.mxu0 0.0
    %303 = vmatpush1.msra.mxu0 %v261
    %304 = vmatprep.subr.mxu0 0.0
    %305 = vmatpush1.msra.mxu0 %v260
    %306 = vmatprep.subr.mxu0 0.0
    %307 = vmatpush1.msra.mxu0 %v259
    %308 = vmatprep.subr.mxu0 0.0
    %309 = vmatpush1.msra.mxu0 %v258
    %310 = vmatprep.subr.mxu0 0.0
    %311 = vmatpush1.msra.mxu0 %v257
    %312 = vmatprep.subr.mxu0 0.0
    %313 = vmatpush2.msra.mxu0 0.0
    %314 = vmatprep.subr.mxu0 0.0
    %315 = vmatpush2.msra.mxu0 0.0
    %316 = vmatprep.subr.mxu0 0.0
    %317 = vmatpush2.msra.mxu0 0.0
    %318 = vmatprep.subr.mxu0 0.0
    %319 = vmatpush2.msra.mxu0 0.0
    %320 = vmatprep.subr.mxu0 0.0
    %321 = vmatpush2.msra.mxu0 0.0
    %322 = vmatprep.subr.mxu0 0.0
    %323 = vmatpush2.msra.mxu0 0.0
    %324 = vmatprep.subr.mxu0 0.0
    %325 = vmatpush2.msra.mxu0 0.0
    %326 = vmatprep.subr.mxu0 0.0
    %327 = vmatpush2.msra.mxu0 0.0
    %328 = vmatprep.subr.mxu0 0.0
    %329 = vmatpush2.msra.mxu0 0.0
    %330 = vmatprep.subr.mxu0 0.0
    %331 = vmatpush2.msra.mxu0 0.0
    %332 = vmatprep.subr.mxu0 0.0
    %333 = vmatpush2.msra.mxu0 0.0
    %334 = vmatprep.subr.mxu0 0.0
    %335 = vmatpush2.msra.mxu0 0.0
    %336 = vmatprep.subr.mxu0 0.0
    %337 = vmatpush2.msra.mxu0 0.0
    %338 = vmatprep.subr.mxu0 0.0
    %339 = vmatpush2.msra.mxu0 0.0
    %340 = vmatprep.subr.mxu0 0.0
    %341 = vmatpush2.msra.mxu0 0.0
    %342 = vmatprep.subr.mxu0 0.0
    %343 = vmatpush2.msra.mxu0 0.0
    %344 = vmatprep.mubr.f32.mxu0 0.0
    %345 = vmatmul.mubr.f32.gmra.mxu0 %v256
    %v346 = vpop.f32.mrf.mxu0
    %v347 = vadd.f32 %v278, %v346
    %v348 = vpop.f32.mrf.mxu0
    %349 = vdwg.mxu0
    %v350 = vmax.f32 %v347, 0.0
    %vm351 = vcmask 130048
    %v352 = vsel %vm351, %v350, -inf
    %353 = vmax.xlane.f32.xlu0 %v352
    %v354 = vpop.xlane.xlu0 %353
    %v355 = vsub.f32 %v350, %v354
    %v356 = vmul.f32 %v355, 1.442695
    %v357 = vpow.pop %v356
    %v358 = vsel %vm351, %v357, 0.0
    %359 = vadd.xlane.f32.xlu0 %v358
    %v360 = vpop.xlane.xlu0 %359
    %v361 = vrcp.pop %v360
    %v362 = vmul.f32 %v357, %v361
    %363 = vst.msk [vmem:[#allocation5] sm:$0xff] %vm351, %v362
    // Predicated region
    $region34: #{tpu_custom_call.1} parent=1 // pred_check
      _
    $region35: #{tpu_custom_call.1} parent=1 // pred_check_branch
      %365 = sbr.rel (0) target = $region37
    $region36: #{tpu_custom_call.1} parent=1 // pred_region
      %s367 = ssub.s32 128, 128
      %368 = vsyncadd [#allocation4], %s367
      %s370 = sshll.u32 [#allocation5], 4
      %s371 = int_to_ptr.vmem [resolvable:$true] %s370
      %373 = dma.vmem_to_hbm [thread:$0]  %s371, 128, %s7, [#allocation4]
    $region37: #{tpu_custom_call.1} parent=1 // pred_fallthru
      _
    // Predicated region
    $region38: #{tpu_custom_call.1} parent=1 // pred_check
      _
    $region39: #{tpu_custom_call.1} parent=1 // pred_check_branch
      %375 = sbr.rel (0) target = $region41
    $region40: #{tpu_custom_call.1} parent=1 // pred_region
      %376 = dma.done [#allocation4], 128
    $region41: #{tpu_custom_call.1} parent=1 // pred_fallthru
      _
    %377 = vsyncpa [#allocation3], 1
    %378 = vsyncpa [#allocation4], 1

</llo_original>
